<compile_context>
chip_gen: v5e
topology: v5e:2x2
jax: 0.10.0
libtpu: 0.0.40
codegen_flags: <defaults>
</compile_context>

<pallas_src>
import jax
import jax.numpy as jnp
from jax import lax
from jax.experimental import pallas as pl
from jax.experimental.pallas import tpu as pltpu

_LANE = 128
_BLOCK_BUDGET_BYTES = 4 * 1024 * 1024  # target per (double-buffered) x block


def _pool_conv_kernel(params_ref, x_ref, conv_ref):
    """Fused channel sum/max + 1x1 conv on one (n_tile, C, l_tile) block.

    params_ref: SMEM (3,) = [w0 / C, w1, bias]
    x_ref:      VMEM (n_tile, C, l_tile) f32
    conv_ref:   VMEM (n_tile, l_tile)    f32
    """
    xt = x_ref[...]                       # (n_tile, C, l_tile)
    s = jnp.sum(xt, axis=1)               # sublane reduce over C -> (n_tile, l_tile)
    m = jnp.max(xt, axis=1)
    conv_ref[...] = params_ref[0] * s + params_ref[1] * m + params_ref[2]


def _choose_tiles(n, c, hw_pad, budget_bytes=_BLOCK_BUDGET_BYTES):
    """Pick (n_tile, l_tile) for an (n_tile, C, l_tile) f32 input block.

    l_tile: multiple of 128 that divides hw_pad, grown toward the byte budget.
    n_tile: divisor of N that is a multiple of 8 or N itself (keeps the 2-D
            conv-output block legal / sublane-dense), grown toward the budget.
    """
    lane_budget = max(_LANE, budget_bytes // (c * 4))
    l_tile = _LANE
    for cand in range(_LANE, hw_pad + 1, _LANE):
        if hw_pad % cand == 0 and cand <= lane_budget:
            l_tile = cand
    n_candidates = [d for d in range(1, n + 1)
                    if n % d == 0 and (d == n or d % 8 == 0)]
    n_tile = n_candidates[0]
    for cand in n_candidates:
        if cand * c * l_tile * 4 <= budget_bytes:
            n_tile = max(n_tile, cand)
    return n_tile, l_tile


def global_extraction(x, conv_w, conv_b, bn_gamma, bn_beta, *, eps=1e-5):
    """x: (N, C, H, W) float32. Returns (N, 1, H, W) float32."""
    N, C, H, W = x.shape
    HW = H * W

    # Lane-dense flattening; pad only to the next multiple of 128 (usually 0).
    hw_pad = ((HW + _LANE - 1) // _LANE) * _LANE
    x3 = x.reshape(N, C, HW).astype(jnp.float32)
    if hw_pad != HW:
        x3 = jnp.pad(x3, ((0, 0), (0, 0), (0, hw_pad - HW)))

    n_tile, l_tile = _choose_tiles(N, C, hw_pad)
    grid = (N // n_tile, hw_pad // l_tile)

    # Conservative, generation-safe VMEM cap derived from the actual blocks.
    x_block_bytes = n_tile * C * l_tile * 4
    o_block_bytes = n_tile * l_tile * 4
    vmem_limit = int(min(48 * 1024 * 1024,
                         max(16 * 1024 * 1024,
                             3 * (x_block_bytes + o_block_bytes))))

    # [w0 / C, w1, bias] as SMEM scalars (mean = sum * (w0/C)).
    params = jnp.stack(
        [conv_w[0] / float(C), conv_w[1], conv_b[0]]).astype(jnp.float32)

    cost = pl.CostEstimate(
        flops=int(2 * N * C * hw_pad + 3 * N * hw_pad),
        transcendentals=0,
        bytes_accessed=int((N * C * hw_pad + N * hw_pad) * 4),
    )

    conv_out = pl.pallas_call(
        _pool_conv_kernel,
        grid=grid,
        out_shape=jax.ShapeDtypeStruct((N, hw_pad), jnp.float32),
        in_specs=[
            pl.BlockSpec(memory_space=pltpu.MemorySpace.SMEM),
            pl.BlockSpec((n_tile, C, l_tile), lambda n, l: (n, 0, l)),
        ],
        out_specs=pl.BlockSpec((n_tile, l_tile), lambda n, l: (n, l)),
        compiler_params=pltpu.CompilerParams(
            dimension_semantics=("parallel", "parallel"),
            vmem_limit_bytes=vmem_limit,
        ),
        cost_estimate=cost,
    )(params, x3)

    # BatchNorm2d(1) in training mode: biased batch statistics over (N, H, W),
    # computed on the tiny conv plane in XLA (two-pass variance, fused with
    # the unpad slice, affine normalize, and reshape).
    conv_valid = conv_out[:, :HW] if hw_pad != HW else conv_out
    mu = jnp.mean(conv_valid)
    var = jnp.mean(jnp.square(conv_valid - mu))
    scale = bn_gamma[0] * lax.rsqrt(var + eps)
    shift = bn_beta[0] - mu * scale
    y = conv_valid * scale + shift
    return y.reshape(N, 1, H, W)


def _reference(x, conv_w, conv_b, bn_gamma, bn_beta, eps=1e-5):
    avg = jnp.mean(x, axis=1, keepdims=True)
    mx = jnp.max(x, axis=1, keepdims=True)
    conv = conv_w[0] * avg + conv_w[1] * mx + conv_b[0]
    mu = jnp.mean(conv)
    var = jnp.mean((conv - mu) ** 2)
    return bn_gamma[0] * (conv - mu) / jnp.sqrt(var + eps) + bn_beta[0]


if __name__ == "__main__":
    key = jax.random.PRNGKey(0)
    N, C, H, W = 2, 4, 16, 16
    x = jax.random.normal(key, (N, C, H, W), dtype=jnp.float32)

    # Deterministic parameters (nn.Conv2d(2,1,1,1) flattened, BN defaults).
    conv_w = jnp.array([0.6, -0.4], dtype=jnp.float32)   # (1,2,1,1) flattened
    conv_b = jnp.array([0.1], dtype=jnp.float32)
    bn_gamma = jnp.array([1.0], dtype=jnp.float32)
    bn_beta = jnp.array([0.0], dtype=jnp.float32)

    ge = jax.jit(global_extraction)
    out = jax.block_until_ready(ge(x, conv_w, conv_b, bn_gamma, bn_beta))

    ref = _reference(x, conv_w, conv_b, bn_gamma, bn_beta)
    assert out.shape == (N, 1, H, W), out.shape
    assert jnp.allclose(out, ref, atol=1e-4, rtol=1e-4), (
        float(jnp.max(jnp.abs(out - ref))))

    print("KERNEL_OK")
</pallas_src>

<mosaic_0001>
module attributes {stable_mosaic.version = 11 : i64} {
  func.func @_pool_conv_kernel(%arg0: i32, %arg1: i32, %arg2: memref<3xf32, #tpu.memory_space<smem>>, %arg3: memref<2x4x256xf32, #tpu.memory_space<vmem>>, %arg4: memref<2x256xf32, #tpu.memory_space<vmem>>) attributes {dimension_semantics = [#tpu.dimension_semantics<parallel>, #tpu.dimension_semantics<parallel>], iteration_bounds = array<i64: 1, 1>, scalar_prefetch = 0 : i64, scratch_operands = 0 : i64, tpu.core_type = #tpu.core_type<tc>, window_params = [{transform_indices = @transform_0, window_bounds = array<i64: 3>}, {transform_indices = @transform_1, window_bounds = array<i64: 2, 4, 256>}, {transform_indices = @transform_2, window_bounds = array<i64: 2, 256>}]} {
    %c0 = arith.constant 0 : index
    %c0_0 = arith.constant 0 : index
    %c0_1 = arith.constant 0 : index
    %0 = vector.load %arg3[%c0, %c0_0, %c0_1] : memref<2x4x256xf32, #tpu.memory_space<vmem>>, vector<2x4x256xf32>
    %cst = arith.constant dense<0.000000e+00> : vector<2x256xf32>
    %1 = vector.multi_reduction <add>, %0, %cst [1] : vector<2x4x256xf32> to vector<2x256xf32>
    %cst_2 = arith.constant dense<0xFF800000> : vector<2x256xf32>
    %2 = vector.multi_reduction <maximumf>, %0, %cst_2 [1] : vector<2x4x256xf32> to vector<2x256xf32>
    %c0_3 = arith.constant 0 : index
    %3 = memref.load %arg2[%c0_3] : memref<3xf32, #tpu.memory_space<smem>>
    %4 = vector.broadcast %3 : f32 to vector<2x256xf32>
    %5 = arith.mulf %4, %1 : vector<2x256xf32>
    %c1 = arith.constant 1 : index
    %6 = memref.load %arg2[%c1] : memref<3xf32, #tpu.memory_space<smem>>
    %7 = vector.broadcast %6 : f32 to vector<2x256xf32>
    %8 = arith.mulf %7, %2 : vector<2x256xf32>
    %9 = arith.addf %5, %8 : vector<2x256xf32>
    %c2 = arith.constant 2 : index
    %10 = memref.load %arg2[%c2] : memref<3xf32, #tpu.memory_space<smem>>
    %11 = vector.broadcast %10 : f32 to vector<2x256xf32>
    %12 = arith.addf %9, %11 : vector<2x256xf32>
    %c0_4 = arith.constant 0 : index
    %c0_5 = arith.constant 0 : index
    %13 = vector.load %arg4[%c0_4, %c0_5] : memref<2x256xf32, #tpu.memory_space<vmem>>, vector<2x256xf32>
    tpu.vector_store %arg4[%c0_4, %c0_5], %12 {strides = array<i32>} : memref<2x256xf32, #tpu.memory_space<vmem>>, vector<2x256xf32>,
    return
  }
  func.func @transform_0(%arg0: i32, %arg1: i32) -> i32 {
    %c0_i32 = arith.constant 0 : i32
    %c0_i32_0 = arith.constant 0 : i32
    return %c0_i32 : i32
  }
  func.func @transform_1(%arg0: i32, %arg1: i32) -> (i32, i32, i32) {
    %c0_i32 = arith.constant 0 : i32
    %c0_i32_0 = arith.constant 0 : i32
    return %arg0, %c0_i32, %arg1 : i32, i32, i32
  }
  func.func @transform_2(%arg0: i32, %arg1: i32) -> (i32, i32) {
    %c0_i32 = arith.constant 0 : i32
    return %arg0, %arg1 : i32, i32
  }
}

</mosaic_0001>

<llo_original>
// kernel: global_extraction.1
$region0: #{global_extraction.1}
  #allocation0 [shape = 'u32[]', space=smem, size = 0x4, offset = 0x4, fixed_abs, tag = 'smem constant byte address 0x4 - core index']
  #allocation1 [shape = 'u32[72,128]{1,0:T(1,128)}', space=vmem, size = 0x9000, scoped, tag = 'internal scratch']
  %s0 = inlined_call_operand.vmem [shape: f32[3], index: 0, kind: input, shape index: {}]
  %s1 = inlined_call_operand.vmem [shape: f32[2,4,256], index: 1, kind: input, shape index: {}]
  %s2 = inlined_call_operand.vmem [shape: f32[2,256], index: 2, kind: output, shape index: {}]
  %s3 = sld [smem:[#allocation0]]
  $region22: #{global_extraction.1} parent=0
    _
  %s5 = ssub.s32 1, %s3
  %s6 = scalar_select 0, %s5, %s3
  $region1: #{global_extraction.1} parent=0
    #allocation2 [shape = 'u8[512]{0}', space=smem, size = 0x200, scoped, tag = 'input window, operand 0, single buffered']
    #allocation3 [shape = 's32[1]{0}', space=sflag, size = 0x4, scoped, tag = 'scoped memory for global_extraction.1']
    %7 = vsyncpa [#allocation3], 0
    // Predicated region
    $region2: #{global_extraction.1} parent=1 // pred_check
      _
    $region3: #{global_extraction.1} parent=1 // pred_check_branch
      %9 = sbr.rel (0) target = $region5
    $region4: #{global_extraction.1} parent=1 // pred_region
      %11 = vsyncadd [#allocation3], 0
      %s13 = sshll.u32 %s0, 4
      %s14 = int_to_ptr.vmem [resolvable:$true] %s13
      %16 = dma.vmem_to_smem %s14, 16, [#allocation2], [#allocation3]
    $region5: #{global_extraction.1} parent=1 // pred_fallthru
      _
    // Predicated region
    $region6: #{global_extraction.1} parent=1 // pred_check
      _
    $region7: #{global_extraction.1} parent=1 // pred_check_branch
      %18 = sbr.rel (0) target = $region9
    $region8: #{global_extraction.1} parent=1 // pred_region
      _
    $region9: #{global_extraction.1} parent=1 // pred_fallthru
      _
    // Predicated region
    $region10: #{global_extraction.1} parent=1 // pred_check
      _
    $region11: #{global_extraction.1} parent=1 // pred_check_branch
      %20 = sbr.rel (0) target = $region13
    $region12: #{global_extraction.1} parent=1 // pred_region
      %22 = dma.done [#allocation3], 16
    $region13: #{global_extraction.1} parent=1 // pred_fallthru
      _
    %23 = sfence
    %v24 = vld [vmem:[%s1] sm:$0xff]
    %v25 = vld [vmem:[%s1 + $0x8] sm:$0xff]
    %28 = vst [vmem:[#allocation1] ss:$2 sm:$0xff] %v24
    %v29 = vld.sshfl [vmem:[#allocation1] sm:$0xff pattern:$0x75316420]
    %v30 = vld.sshfl [vmem:[#allocation1 + $0x8] sm:$0xff pattern:$0x75316420]
    %s31 = scalar_lea.vmem [#allocation1], 16
    %32 = vst [vmem:[%s31] ss:$2 sm:$0xff] %v25
    %v33 = vld.sshfl [vmem:[#allocation1 + $0x10] sm:$0xff pattern:$0x75316420]
    %v34 = vld.sshfl [vmem:[#allocation1 + $0x18] sm:$0xff pattern:$0x75316420]
    %vm39 = vcmask 1043456
    %v40 = vsel %vm39, %v29, 0.0
    %v41 = vrot.slane %v40, 4
    %v42 = vadd.f32 %v40, %v41
    %v43 = vrot.slane %v42, 2
    %v44 = vadd.f32 %v42, %v43
    %v45 = vrot.slane %v44, 1
    %v46 = vadd.f32 %v44, %v45
    %v47 = vsel %vm39, %v30, 0.0
    %v48 = vrot.slane %v47, 4
    %v49 = vadd.f32 %v47, %v48
    %v50 = vrot.slane %v49, 2
    %v51 = vadd.f32 %v49, %v50
    %v52 = vrot.slane %v51, 1
    %v53 = vadd.f32 %v51, %v52
    %v54 = vsel %vm39, %v33, 0.0
    %v55 = vrot.slane %v54, 4
    %v56 = vadd.f32 %v54, %v55
    %v57 = vrot.slane %v56, 2
    %v58 = vadd.f32 %v56, %v57
    %v59 = vrot.slane %v58, 1
    %v60 = vadd.f32 %v58, %v59
    %v61 = vsel %vm39, %v34, 0.0
    %v62 = vrot.slane %v61, 4
    %v63 = vadd.f32 %v61, %v62
    %v64 = vrot.slane %v63, 2
    %v65 = vadd.f32 %v63, %v64
    %v66 = vrot.slane %v65, 1
    %v67 = vadd.f32 %v65, %v66
    %68 = vst [vmem:[#allocation1] ss:$2 sm:$0xff] %v24
    %v69 = vld.sshfl [vmem:[#allocation1] sm:$0xff pattern:$0x75316420]
    %v70 = vld.sshfl [vmem:[#allocation1 + $0x8] sm:$0xff pattern:$0x75316420]
    %s71 = scalar_lea.vmem [#allocation1], 16
    %72 = vst [vmem:[%s71] ss:$2 sm:$0xff] %v25
    %v73 = vld.sshfl [vmem:[#allocation1 + $0x10] sm:$0xff pattern:$0x75316420]
    %v74 = vld.sshfl [vmem:[#allocation1 + $0x18] sm:$0xff pattern:$0x75316420]
    %v79 = vsel %vm39, %v69, -inf
    %v80 = vrot.slane %v79, 4
    %v81 = vmax.f32 %v79, %v80
    %v82 = vrot.slane %v81, 2
    %v83 = vmax.f32 %v81, %v82
    %v84 = vrot.slane %v83, 1
    %v85 = vmax.f32 %v83, %v84
    %v86 = vsel %vm39, %v70, -inf
    %v87 = vrot.slane %v86, 4
    %v88 = vmax.f32 %v86, %v87
    %v89 = vrot.slane %v88, 2
    %v90 = vmax.f32 %v88, %v89
    %v91 = vrot.slane %v90, 1
    %v92 = vmax.f32 %v90, %v91
    %v93 = vsel %vm39, %v73, -inf
    %v94 = vrot.slane %v93, 4
    %v95 = vmax.f32 %v93, %v94
    %v96 = vrot.slane %v95, 2
    %v97 = vmax.f32 %v95, %v96
    %v98 = vrot.slane %v97, 1
    %v99 = vmax.f32 %v97, %v98
    %v100 = vsel %vm39, %v74, -inf
    %v101 = vrot.slane %v100, 4
    %v102 = vmax.f32 %v100, %v101
    %v103 = vrot.slane %v102, 2
    %v104 = vmax.f32 %v102, %v103
    %v105 = vrot.slane %v104, 1
    %v106 = vmax.f32 %v104, %v105
    %s107 = sld [smem:[#allocation2]]
    %v108 = vstv %s107
    %v109 = vmul.f32 %v108, %v46
    %v110 = vmul.f32 %v108, %v53
    %v111 = vmul.f32 %v108, %v60
    %v112 = vmul.f32 %v108, %v67
    %s113 = sld [smem:[#allocation2 + $0x1]]
    %v114 = vstv %s113
    %v115 = vmul.f32 %v114, %v85
    %v116 = vmul.f32 %v114, %v92
    %v117 = vmul.f32 %v114, %v99
    %v118 = vmul.f32 %v114, %v106
    %v119 = vadd.f32 %v109, %v115
    %v120 = vadd.f32 %v110, %v116
    %v121 = vadd.f32 %v111, %v117
    %v122 = vadd.f32 %v112, %v118
    %s123 = sld [smem:[#allocation2 + $0x2]]
    %v124 = vstv %s123
    %v125 = vadd.f32 %v119, %v124
    %v126 = vadd.f32 %v120, %v124
    %v127 = vadd.f32 %v121, %v124
    %v128 = vadd.f32 %v122, %v124
    %v133 = vrot.slane %v126, 6
    %v134 = vrot.slane %v128, 6
    %vm135 = vcmask 1041408
    %v136 = vsel %vm135, %v125, %v133
    %v137 = vsel %vm135, %v127, %v134
    %vm138 = vcmask 1044484
    %v139 = vsel %vm138, %v136, %v136
    %vm140 = vcmask 1046534
    %v141 = vsel %vm140, %v136, %v139
    %v142 = vrot.slane %v137, 7
    %vm143 = vcmask 1041409
    %v144 = vsel %vm143, %v142, %v141
    %vm145 = vcmask 1043459
    %v146 = vsel %vm145, %v142, %v144
    %vm147 = vcmask 1045509
    %v148 = vsel %vm147, %v142, %v146
    %vm149 = vcmask 1047559
    %v150 = vsel %vm149, %v142, %v148
    %152 = vst [vmem:[%s2] sm:$0xf] %v150
    // Predicated region
    $region14: #{global_extraction.1} parent=1 // pred_check
      _
    $region15: #{global_extraction.1} parent=1 // pred_check_branch
      %154 = sbr.rel (0) target = $region17
    $region16: #{global_extraction.1} parent=1 // pred_region
      _
    $region17: #{global_extraction.1} parent=1 // pred_fallthru
      _
    // Predicated region
    $region18: #{global_extraction.1} parent=1 // pred_check
      _
    $region19: #{global_extraction.1} parent=1 // pred_check_branch
      %156 = sbr.rel (0) target = $region21
    $region20: #{global_extraction.1} parent=1 // pred_region
      _
    $region21: #{global_extraction.1} parent=1 // pred_fallthru
      _
    %157 = vsyncpa [#allocation3], 1

</llo_original>
